<compile_context>
chip_gen: v5e
topology: v5e:2x2
jax: 0.10.0
libtpu: 0.0.40
codegen_flags: <defaults>
</compile_context>

<pallas_src>
import functools

import jax
import jax.numpy as jnp
from jax.experimental import pallas as pl
from jax.experimental.pallas import tpu as pltpu

LANE = 128        # hidden / class dims padded to one full lane tile
OUT_PAD = 8       # stored class width (>= n_classes); keeps HBM writeback tiny
NEG_BIG = -1e30   # bias for padded (fake) classes -> exp underflows to exactly 0


def _round_up(n, m):
    return ((n + m - 1) // m) * m


def mlp_kernel(x_ref, w1_ref, b1_ref, w2_ref, b2_ref, w3_ref, b3_ref,
               wL_ref, bL_ref, out_ref):
    """Full forward pass for one (TB, size) batch tile.  Weights are VMEM-resident.

    MXU matmuls are bf16 x bf16 -> f32; bias add / ReLU / log_softmax run in f32.
    """
    h = x_ref[...].astype(jnp.bfloat16)

    h = jnp.dot(h, w1_ref[...], preferred_element_type=jnp.float32) + b1_ref[...]
    h = jnp.maximum(h, 0.0).astype(jnp.bfloat16)

    h = jnp.dot(h, w2_ref[...], preferred_element_type=jnp.float32) + b2_ref[...]
    h = jnp.maximum(h, 0.0).astype(jnp.bfloat16)

    h = jnp.dot(h, w3_ref[...], preferred_element_type=jnp.float32) + b3_ref[...]
    h = jnp.maximum(h, 0.0).astype(jnp.bfloat16)

    logits = jnp.dot(h, wL_ref[...], preferred_element_type=jnp.float32) + bL_ref[...]

    # log_softmax over the lane (class) dim.  Padded classes have zero weights and
    # bias -1e30, so exp(shifted) underflows to exactly 0 for them -> result over
    # the real classes matches F.log_softmax(logits_real, dim=1).
    m = jnp.max(logits, axis=-1, keepdims=True)            # XLU lane reduction
    shifted = logits - m
    lse = jnp.log(jnp.sum(jnp.exp(shifted), axis=-1, keepdims=True))  # EUP + XLU
    out = shifted - lse
    # Store only the first OUT_PAD lanes: 32 B/row of HBM writeback instead of 512.
    out_ref[...] = out[:, :out_ref.shape[1]].astype(out_ref.dtype)


def net_forward(x, padded_params, *, tb=4096):
    """x: (B, size) f32.  padded_params: lane-padded (bf16-weight) params from pad_params().

    Returns the padded (B_pad, OUT_PAD) f32 log-softmax buffer; callers slice
    [:B, :n_classes] lazily so the hot path avoids an extra XLA copy kernel.
    """
    B, size = x.shape
    p = padded_params
    HP = p["w1"].shape[1]   # padded hidden dim (128)
    CP = p["wL"].shape[1]   # padded class dim (128)

    # Batch tile: multiple of 8 sublanes (robust to odd tb), capped at the batch.
    tb = max(8, _round_up(tb, 8))
    TB = min(tb, _round_up(B, 8))
    # Prefer >= 2 grid steps so the "parallel" batch axis spans both v7x TensorCores.
    if _round_up(B, TB) // TB < 2 and B > 8:
        TB = _round_up((B + 1) // 2, 8)
    B_pad = _round_up(B, TB)
    if B_pad != B:
        x = jnp.pad(x, ((0, B_pad - B), (0, 0)))
    grid = (B_pad // TB,)

    args = (x, p["w1"], p["b1"], p["w2"], p["b2"], p["w3"], p["b3"],
            p["wL"], p["bL"])

    # Weights/biases: constant index_map -> loaded once, VMEM-resident across steps.
    const2 = lambda i: (0, 0)
    in_specs = [
        pl.BlockSpec((TB, size), lambda i: (i, 0)),   # x streams per batch tile
        pl.BlockSpec((size, HP), const2),
        pl.BlockSpec((1, HP), const2),
        pl.BlockSpec((HP, HP), const2),
        pl.BlockSpec((1, HP), const2),
        pl.BlockSpec((HP, HP), const2),
        pl.BlockSpec((1, HP), const2),
        pl.BlockSpec((HP, CP), const2),
        pl.BlockSpec((1, CP), const2),
    ]
    # Narrow output: block last dim equals the full array dim (OUT_PAD), so legal.
    out_specs = pl.BlockSpec((TB, OUT_PAD), lambda i: (i, 0))

    weight_bytes = sum(int(p[k].size) * p[k].dtype.itemsize for k in p)
    # VMEM budget: double-buffered x/out tiles + ~6 live (TB, HP) f32 intermediates
    # + weights, x2 headroom, capped below v7x's 64 MiB physical per-TC VMEM.
    est = (2 * TB * size * 4 + 2 * TB * OUT_PAD * 4
           + 6 * TB * HP * 4 + 2 * weight_bytes)
    vmem_limit = int(min(56 * 2**20, max(32 * 2**20, 2 * est)))

    flops = 2 * B_pad * (size * HP + 2 * HP * HP + HP * CP)
    cost = pl.CostEstimate(
        flops=flops,
        transcendentals=B_pad * (CP + 1),          # exp per lane + log per row
        bytes_accessed=int(x.size) * 4 + weight_bytes + B_pad * OUT_PAD * 4,
    )

    return pl.pallas_call(
        mlp_kernel,
        out_shape=jax.ShapeDtypeStruct((B_pad, OUT_PAD), jnp.float32),
        grid=grid,
        in_specs=in_specs,
        out_specs=out_specs,
        compiler_params=pltpu.CompilerParams(
            dimension_semantics=("parallel",),
            vmem_limit_bytes=vmem_limit),
        cost_estimate=cost,
    )(*args)


def init_linear(key, fan_in, fan_out):
    # PyTorch nn.Linear default init: U(-1/sqrt(fan_in), 1/sqrt(fan_in)).
    kw, kb = jax.random.split(key)
    bound = 1.0 / jnp.sqrt(jnp.float32(fan_in))
    w = jax.random.uniform(kw, (fan_in, fan_out), jnp.float32, -bound, bound)
    b = jax.random.uniform(kb, (1, fan_out), jnp.float32, -bound, bound)
    return w, b


def make_params(size, layer_size, key, n_classes=3):
    k1, k2, k3, kL = jax.random.split(key, 4)
    w1, b1 = init_linear(k1, size, layer_size)
    w2, b2 = init_linear(k2, layer_size, layer_size)
    w3, b3 = init_linear(k3, layer_size, layer_size)
    wL, bL = init_linear(kL, layer_size, n_classes)
    return {"w1": w1, "b1": b1, "w2": w2, "b2": b2,
            "w3": w3, "b3": b3, "wL": wL, "bL": bL}


def pad_params(params):
    """Zero-pad hidden/class dims to LANE and cast weights to bf16.

    Zero padding is exact: padded hidden units are ReLU(0 + 0) = 0 and feed zero
    weights forward; padded classes get bias NEG_BIG (f32) so they vanish in
    log_softmax.  Biases stay f32 so the bias-add / epilogue run in f32.
    """
    def pad_to(a, rows, cols, fill=0.0):
        return jnp.pad(a, ((0, rows - a.shape[0]), (0, cols - a.shape[1])),
                       constant_values=fill)

    size = params["w1"].shape[0]
    HP, CP = LANE, LANE
    return {
        "w1": pad_to(params["w1"], size, HP).astype(jnp.bfloat16),
        "b1": pad_to(params["b1"], 1, HP),
        "w2": pad_to(params["w2"], HP, HP).astype(jnp.bfloat16),
        "b2": pad_to(params["b2"], 1, HP),
        "w3": pad_to(params["w3"], HP, HP).astype(jnp.bfloat16),
        "b3": pad_to(params["b3"], 1, HP),
        "wL": pad_to(params["wL"], HP, CP).astype(jnp.bfloat16),
        "bL": pad_to(params["bL"], 1, CP, fill=NEG_BIG),
    }


def ref_forward(x, params):
    """Pure-JAX f32 reference matching the PyTorch Net.forward."""
    h = jax.nn.relu(x @ params["w1"] + params["b1"])
    h = jax.nn.relu(h @ params["w2"] + params["b2"])
    h = jax.nn.relu(h @ params["w3"] + params["b3"])
    logits = h @ params["wL"] + params["bL"]
    return jax.nn.log_softmax(logits, axis=-1)


if __name__ == "__main__":
    size = 32          # input feature dim
    layer_size = 20    # hidden dim (Net(size, layer_size=20))
    n_classes = 3
    batch = 24         # small, but multiple grid steps below to exercise the grid path
    assert n_classes <= OUT_PAD

    key = jax.random.PRNGKey(0)
    kx, kp = jax.random.split(key)
    x = jax.random.normal(kx, (batch, size), jnp.float32)
    params = make_params(size, layer_size, kp, n_classes)
    padded = pad_params(params)

    # tb=8 -> 3 grid steps of 8 rows each (weights stay VMEM-resident across them).
    fwd = jax.jit(functools.partial(net_forward, tb=8))
    out_padded = jax.block_until_ready(fwd(x, padded))
    out = out_padded[:batch, :n_classes]     # consumer-side lazy slice

    assert out.shape == (batch, n_classes)
    # log_softmax rows exponentiate-sum to ~1.
    row_sums = jnp.exp(out).sum(axis=-1)
    assert bool(jnp.all(jnp.abs(row_sums - 1.0) < 1e-3))
    # Matches the unpadded f32 pure-JAX reference (bf16 MXU matmuls -> looser tol).
    ref = ref_forward(x, params)
    max_err = float(jnp.max(jnp.abs(out - ref)))
    assert max_err < 5e-2, max_err

    print("KERNEL_OK")
</pallas_src>

<mosaic_0001>
module attributes {stable_mosaic.version = 11 : i64} {
  func.func @mlp_kernel(%arg0: i32, %arg1: memref<8x32xf32, #tpu.memory_space<vmem>>, %arg2: memref<32x128xbf16, #tpu.memory_space<vmem>>, %arg3: memref<1x128xf32, #tpu.memory_space<vmem>>, %arg4: memref<128x128xbf16, #tpu.memory_space<vmem>>, %arg5: memref<1x128xf32, #tpu.memory_space<vmem>>, %arg6: memref<128x128xbf16, #tpu.memory_space<vmem>>, %arg7: memref<1x128xf32, #tpu.memory_space<vmem>>, %arg8: memref<128x128xbf16, #tpu.memory_space<vmem>>, %arg9: memref<1x128xf32, #tpu.memory_space<vmem>>, %arg10: memref<8x8xf32, #tpu.memory_space<vmem>>) attributes {dimension_semantics = [#tpu.dimension_semantics<parallel>], iteration_bounds = array<i64: 3>, scalar_prefetch = 0 : i64, scratch_operands = 0 : i64, tpu.core_type = #tpu.core_type<tc>, window_params = [{transform_indices = @transform_0, window_bounds = array<i64: 8, 32>}, {pipeline_mode = #tpu.pipeline_mode<synchronous>, transform_indices = @transform_1, window_bounds = array<i64: 32, 128>}, {pipeline_mode = #tpu.pipeline_mode<synchronous>, transform_indices = @transform_2, window_bounds = array<i64: 1, 128>}, {pipeline_mode = #tpu.pipeline_mode<synchronous>, transform_indices = @transform_3, window_bounds = array<i64: 128, 128>}, {pipeline_mode = #tpu.pipeline_mode<synchronous>, transform_indices = @transform_4, window_bounds = array<i64: 1, 128>}, {pipeline_mode = #tpu.pipeline_mode<synchronous>, transform_indices = @transform_5, window_bounds = array<i64: 128, 128>}, {pipeline_mode = #tpu.pipeline_mode<synchronous>, transform_indices = @transform_6, window_bounds = array<i64: 1, 128>}, {pipeline_mode = #tpu.pipeline_mode<synchronous>, transform_indices = @transform_7, window_bounds = array<i64: 128, 128>}, {pipeline_mode = #tpu.pipeline_mode<synchronous>, transform_indices = @transform_8, window_bounds = array<i64: 1, 128>}, {transform_indices = @transform_9, window_bounds = array<i64: 8, 8>}]} {
    %c0 = arith.constant 0 : index
    %c0_0 = arith.constant 0 : index
    %0 = vector.load %arg1[%c0, %c0_0] : memref<8x32xf32, #tpu.memory_space<vmem>>, vector<8x32xf32>
    %1 = arith.truncf %0 : vector<8x32xf32> to vector<8x32xbf16>
    %c0_1 = arith.constant 0 : index
    %c0_2 = arith.constant 0 : index
    %2 = vector.load %arg2[%c0_1, %c0_2] : memref<32x128xbf16, #tpu.memory_space<vmem>>, vector<32x128xbf16>
    %cst = arith.constant dense<0.000000e+00> : vector<8x128xf32>
    %3 = tpu.matmul %1, %2, %cst {dimension_numbers = #tpu.dot_dimension_numbers<[1], [0], [0], [1], [0, 0, 1, 1], [], []>} : vector<8x32xbf16>, vector<32x128xbf16>, vector<8x128xf32> -> vector<8x128xf32>
    %c0_3 = arith.constant 0 : index
    %c0_4 = arith.constant 0 : index
    %4 = vector.load %arg3[%c0_3, %c0_4] : memref<1x128xf32, #tpu.memory_space<vmem>>, vector<1x128xf32>
    %5 = vector.broadcast %4 : vector<1x128xf32> to vector<8x128xf32>
    %6 = arith.addf %3, %5 : vector<8x128xf32>
    %cst_5 = arith.constant 0.000000e+00 : f32
    %7 = vector.broadcast %cst_5 : f32 to vector<8x128xf32>
    %8 = arith.maximumf %6, %7 : vector<8x128xf32>
    %9 = arith.truncf %8 : vector<8x128xf32> to vector<8x128xbf16>
    %c0_6 = arith.constant 0 : index
    %c0_7 = arith.constant 0 : index
    %10 = vector.load %arg4[%c0_6, %c0_7] : memref<128x128xbf16, #tpu.memory_space<vmem>>, vector<128x128xbf16>
    %cst_8 = arith.constant dense<0.000000e+00> : vector<8x128xf32>
    %11 = tpu.matmul %9, %10, %cst_8 {dimension_numbers = #tpu.dot_dimension_numbers<[1], [0], [0], [1], [0, 0, 1, 1], [], []>} : vector<8x128xbf16>, vector<128x128xbf16>, vector<8x128xf32> -> vector<8x128xf32>
    %c0_9 = arith.constant 0 : index
    %c0_10 = arith.constant 0 : index
    %12 = vector.load %arg5[%c0_9, %c0_10] : memref<1x128xf32, #tpu.memory_space<vmem>>, vector<1x128xf32>
    %13 = vector.broadcast %12 : vector<1x128xf32> to vector<8x128xf32>
    %14 = arith.addf %11, %13 : vector<8x128xf32>
    %cst_11 = arith.constant 0.000000e+00 : f32
    %15 = vector.broadcast %cst_11 : f32 to vector<8x128xf32>
    %16 = arith.maximumf %14, %15 : vector<8x128xf32>
    %17 = arith.truncf %16 : vector<8x128xf32> to vector<8x128xbf16>
    %c0_12 = arith.constant 0 : index
    %c0_13 = arith.constant 0 : index
    %18 = vector.load %arg6[%c0_12, %c0_13] : memref<128x128xbf16, #tpu.memory_space<vmem>>, vector<128x128xbf16>
    %cst_14 = arith.constant dense<0.000000e+00> : vector<8x128xf32>
    %19 = tpu.matmul %17, %18, %cst_14 {dimension_numbers = #tpu.dot_dimension_numbers<[1], [0], [0], [1], [0, 0, 1, 1], [], []>} : vector<8x128xbf16>, vector<128x128xbf16>, vector<8x128xf32> -> vector<8x128xf32>
    %c0_15 = arith.constant 0 : index
    %c0_16 = arith.constant 0 : index
    %20 = vector.load %arg7[%c0_15, %c0_16] : memref<1x128xf32, #tpu.memory_space<vmem>>, vector<1x128xf32>
    %21 = vector.broadcast %20 : vector<1x128xf32> to vector<8x128xf32>
    %22 = arith.addf %19, %21 : vector<8x128xf32>
    %cst_17 = arith.constant 0.000000e+00 : f32
    %23 = vector.broadcast %cst_17 : f32 to vector<8x128xf32>
    %24 = arith.maximumf %22, %23 : vector<8x128xf32>
    %25 = arith.truncf %24 : vector<8x128xf32> to vector<8x128xbf16>
    %c0_18 = arith.constant 0 : index
    %c0_19 = arith.constant 0 : index
    %26 = vector.load %arg8[%c0_18, %c0_19] : memref<128x128xbf16, #tpu.memory_space<vmem>>, vector<128x128xbf16>
    %cst_20 = arith.constant dense<0.000000e+00> : vector<8x128xf32>
    %27 = tpu.matmul %25, %26, %cst_20 {dimension_numbers = #tpu.dot_dimension_numbers<[1], [0], [0], [1], [0, 0, 1, 1], [], []>} : vector<8x128xbf16>, vector<128x128xbf16>, vector<8x128xf32> -> vector<8x128xf32>
    %c0_21 = arith.constant 0 : index
    %c0_22 = arith.constant 0 : index
    %28 = vector.load %arg9[%c0_21, %c0_22] : memref<1x128xf32, #tpu.memory_space<vmem>>, vector<1x128xf32>
    %29 = vector.broadcast %28 : vector<1x128xf32> to vector<8x128xf32>
    %30 = arith.addf %27, %29 : vector<8x128xf32>
    %cst_23 = arith.constant dense<0xFF800000> : vector<8xf32>
    %31 = vector.multi_reduction <maximumf>, %30, %cst_23 [1] : vector<8x128xf32> to vector<8xf32>
    %32 = vector.shape_cast %31 : vector<8xf32> to vector<8x1xf32>
    %33 = vector.broadcast %32 : vector<8x1xf32> to vector<8x128xf32>
    %34 = arith.subf %30, %33 : vector<8x128xf32>
    %35 = math.exp %34 : vector<8x128xf32>
    %cst_24 = arith.constant dense<0.000000e+00> : vector<8xf32>
    %36 = vector.multi_reduction <add>, %35, %cst_24 [1] : vector<8x128xf32> to vector<8xf32>
    %37 = vector.shape_cast %36 : vector<8xf32> to vector<8x1xf32>
    %38 = math.log %37 : vector<8x1xf32>
    %39 = vector.broadcast %38 : vector<8x1xf32> to vector<8x128xf32>
    %40 = arith.subf %34, %39 : vector<8x128xf32>
    %41 = vector.extract_strided_slice %40 {offsets = [0, 0], sizes = [8, 8], strides = [1, 1]} : vector<8x128xf32> to vector<8x8xf32>
    %c0_25 = arith.constant 0 : index
    %c0_26 = arith.constant 0 : index
    %42 = vector.load %arg10[%c0_25, %c0_26] : memref<8x8xf32, #tpu.memory_space<vmem>>, vector<8x8xf32>
    tpu.vector_store %arg10[%c0_25, %c0_26], %41 {strides = array<i32>} : memref<8x8xf32, #tpu.memory_space<vmem>>, vector<8x8xf32>,
    return
  }
  func.func @transform_0(%arg0: i32) -> (i32, i32) {
    %c0_i32 = arith.constant 0 : i32
    %c0_i32_0 = arith.constant 0 : i32
    return %arg0, %c0_i32 : i32, i32
  }
  func.func @transform_1(%arg0: i32) -> (i32, i32) {
    %c0_i32 = arith.constant 0 : i32
    %c0_i32_0 = arith.constant 0 : i32
    %c0_i32_1 = arith.constant 0 : i32
    return %c0_i32, %c0_i32_0 : i32, i32
  }
  func.func @transform_2(%arg0: i32) -> (i32, i32) {
    %c0_i32 = arith.constant 0 : i32
    %c0_i32_0 = arith.constant 0 : i32
    %c0_i32_1 = arith.constant 0 : i32
    return %c0_i32, %c0_i32_0 : i32, i32
  }
  func.func @transform_3(%arg0: i32) -> (i32, i32) {
    %c0_i32 = arith.constant 0 : i32
    %c0_i32_0 = arith.constant 0 : i32
    %c0_i32_1 = arith.constant 0 : i32
    return %c0_i32, %c0_i32_0 : i32, i32
  }
  func.func @transform_4(%arg0: i32) -> (i32, i32) {
    %c0_i32 = arith.constant 0 : i32
    %c0_i32_0 = arith.constant 0 : i32
    %c0_i32_1 = arith.constant 0 : i32
    return %c0_i32, %c0_i32_0 : i32, i32
  }
  func.func @transform_5(%arg0: i32) -> (i32, i32) {
    %c0_i32 = arith.constant 0 : i32
    %c0_i32_0 = arith.constant 0 : i32
    %c0_i32_1 = arith.constant 0 : i32
    return %c0_i32, %c0_i32_0 : i32, i32
  }
  func.func @transform_6(%arg0: i32) -> (i32, i32) {
    %c0_i32 = arith.constant 0 : i32
    %c0_i32_0 = arith.constant 0 : i32
    %c0_i32_1 = arith.constant 0 : i32
    return %c0_i32, %c0_i32_0 : i32, i32
  }
  func.func @transform_7(%arg0: i32) -> (i32, i32) {
    %c0_i32 = arith.constant 0 : i32
    %c0_i32_0 = arith.constant 0 : i32
    %c0_i32_1 = arith.constant 0 : i32
    return %c0_i32, %c0_i32_0 : i32, i32
  }
  func.func @transform_8(%arg0: i32) -> (i32, i32) {
    %c0_i32 = arith.constant 0 : i32
    %c0_i32_0 = arith.constant 0 : i32
    %c0_i32_1 = arith.constant 0 : i32
    return %c0_i32, %c0_i32_0 : i32, i32
  }
  func.func @transform_9(%arg0: i32) -> (i32, i32) {
    %c0_i32 = arith.constant 0 : i32
    %c0_i32_0 = arith.constant 0 : i32
    return %arg0, %c0_i32 : i32, i32
  }
}

</mosaic_0001>

<llo_original>
// kernel: net_forward.1
$region0: #{net_forward.1}
  #allocation0 [shape = 'u32[]', space=smem, size = 0x4, offset = 0x4, fixed_abs, tag = 'smem constant byte address 0x4 - core index']
  #allocation1 [shape = 'u32[72,128]{1,0:T(1,128)}', space=vmem, size = 0x9000, scoped, tag = 'internal scratch']
  %s0 = inlined_call_operand.hbm [shape: f32[24,32], index: 0, kind: input, shape index: {}]
  %s1 = inlined_call_operand.hbm [shape: bf16[32,128], index: 1, kind: input, shape index: {}]
  %s2 = inlined_call_operand.hbm [shape: f32[1,128], index: 2, kind: input, shape index: {}]
  %s3 = inlined_call_operand.hbm [shape: bf16[128,128], index: 3, kind: input, shape index: {}]
  %s4 = inlined_call_operand.vmem [shape: f32[1,128], index: 4, kind: input, shape index: {}]
  %s5 = inlined_call_operand.hbm [shape: bf16[128,128], index: 5, kind: input, shape index: {}]
  %s6 = inlined_call_operand.vmem [shape: f32[1,128], index: 6, kind: input, shape index: {}]
  %s7 = inlined_call_operand.hbm [shape: bf16[128,128], index: 7, kind: input, shape index: {}]
  %s8 = inlined_call_operand.vmem [shape: f32[1,128], index: 8, kind: input, shape index: {}]
  %s9 = inlined_call_operand.vmem [shape: f32[24,8], index: 9, kind: output, shape index: {}]
  %s10 = sld [smem:[#allocation0]]
  $region93: #{net_forward.1} parent=0
    _
  %s12 = ssub.s32 1, %s10
  %s13 = scalar_select 0, %s12, %s10
  $region1: #{net_forward.1} parent=0
    #allocation2 [shape = 'u8[8192]{0}', space=vmem, size = 0x2000, scoped, tag = 'input window, operand 0']
    #allocation3 [shape = 's32[2]{0}', space=sflag, size = 0x8, scoped, tag = 'scoped memory for net_forward.1']
    #allocation4 [shape = 'u8[8192]{0}', space=vmem, size = 0x2000, scoped, tag = 'input window, operand 1, single buffered']
    #allocation5 [shape = 's32[1]{0}', space=sflag, size = 0x4, scoped, tag = 'scoped memory for net_forward.1']
    #allocation6 [shape = 'u8[512]{0}', space=vmem, size = 0x400, scoped, tag = 'input window, operand 2, single buffered']
    #allocation7 [shape = 'u8[32768]{0}', space=vmem, size = 0x8000, scoped, tag = 'input window, operand 3, single buffered']
    #allocation8 [shape = 's32[1]{0}', space=sflag, size = 0x4, scoped, tag = 'scoped memory for net_forward.1']
    #allocation9 [shape = 'u8[32768]{0}', space=vmem, size = 0x8000, scoped, tag = 'input window, operand 5, single buffered']
    #allocation10 [shape = 'u8[32768]{0}', space=vmem, size = 0x8000, scoped, tag = 'input window, operand 7, single buffered']
    #allocation11 [shape = 's32[1]{0}', space=sflag, size = 0x4, scoped, tag = 'scoped memory for net_forward.1']
    %14 = vsyncpa [#allocation3], 0
    %s15 = scalar_lea.sflag [#allocation3], 1
    %16 = vsyncpa %s15, 0
    %17 = vsyncpa [#allocation5], 0
    %18 = vsyncpa [#allocation8], 0
    %19 = vsyncpa [#allocation11], 0
    loop: start=0, step=1, limit=5
    $region2: #{net_forward.1} parent=1 // loop_pre_header
      _
    $region3: #{net_forward.1} parent=1 // loop_header
      %s21 = sphi 0, %s25
      %p22 = scmp.ge.s32.totalorder %s21, 5
      %s31 = sphi 0, %s33
      %s34 = sphi 0, %s31
      %s35 = sphi 0, %s34
      %s51 = sphi 0, %s35
      %s55 = sphi 0, %s55
      %s57 = sphi 0, %s55
      %s58 = sphi 0, %s57
      %s72 = sphi 0, %s58
      %s76 = sphi 0, %s76
      %s78 = sphi 0, %s76
      %s79 = sphi 0, %s78
      %s93 = sphi 0, %s79
      %s97 = sphi 0, %s97
      %s99 = sphi 0, %s97
      %s100 = sphi 0, %s99
      %s114 = sphi 0, %s100
      %s118 = sphi 0, %s118
      %s120 = sphi 0, %s118
      %s121 = sphi 0, %s120
      %s135 = sphi 0, %s121
      %s139 = sphi 0, %s139
      %s141 = sphi 0, %s139
      %s142 = sphi 0, %s141
      %s156 = sphi 0, %s142
      %s160 = sphi 0, %s160
      %s162 = sphi 0, %s160
      %s163 = sphi 0, %s162
      %s177 = sphi 0, %s163
      %s181 = sphi 0, %s181
      %s183 = sphi 0, %s181
      %s184 = sphi 0, %s183
      %s198 = sphi 0, %s184
      %s202 = sphi 0, %s202
      %s204 = sphi 0, %s202
      %s205 = sphi 0, %s204
      %s219 = sphi 0, %s205
      %s225 = sphi 0, %s227
      %s228 = sphi 0, %s225
      %s229 = sphi 0, %s228
      %s245 = sphi 0, %s229
    $region4: #{net_forward.1} parent=1 // loop_header_branch
      %24 = sbr.rel (%p22) target = $region8
    $region5: #{net_forward.1} parent=1 // loop_body
      %s26 = ssub.s32 %s21, 1
      %s27 = ssub.s32 %s21, 2
      %s28 = sadd.s32 %s21, 1
      %s29 = ssub.s32 %s21, %s28
      %p30 = scmp.eq.s32.totalorder %s29, 0
      %s32 = sadd.s32 %s31, 1
      %s33 = scalar_select %p30, %s31, %s32
      %p36 = pneg %p30
      %p37 = scmp.eq.s32.totalorder %s21, 2
      %p38 = por %p36, %p37
      %p39 = scmp.ne.s32.totalorder %s31, %s34
      %p40 = scmp.eq.s32.totalorder %s21, 0
      %p41 = por %p39, %p40
      %p42 = scmp.ne.s32.totalorder %s31, %s34
      %p43 = scmp.eq.s32.totalorder %s26, 2
      %p44 = por %p42, %p43
      %p45 = scmp.ne.s32.totalorder %s34, %s35
      %p46 = scmp.eq.s32.totalorder %s26, 0
      %p47 = por %p45, %p46
      %p48 = scmp.ne.s32.totalorder %s34, %s35
      %p49 = scmp.eq.s32.totalorder %s27, 2
      %p50 = por %p48, %p49
      %p52 = scmp.ne.s32.totalorder %s35, %s51
      %p53 = scmp.eq.s32.totalorder %s27, 0
      %p54 = por %p52, %p53
      %s56 = sadd.s32 %s55, 1
      %p59 = scmp.eq.s32.totalorder %s21, 2
      %p60 = scmp.ne.s32.totalorder %s55, %s57
      %p61 = scmp.eq.s32.totalorder %s21, 0
      %p62 = por %p60, %p61
      %p63 = scmp.ne.s32.totalorder %s55, %s57
      %p64 = scmp.eq.s32.totalorder %s26, 2
      %p65 = por %p63, %p64
      %p66 = scmp.ne.s32.totalorder %s57, %s58
      %p67 = scmp.eq.s32.totalorder %s26, 0
      %p68 = por %p66, %p67
      %p69 = scmp.ne.s32.totalorder %s57, %s58
      %p70 = scmp.eq.s32.totalorder %s27, 2
      %p71 = por %p69, %p70
      %p73 = scmp.ne.s32.totalorder %s58, %s72
      %p74 = scmp.eq.s32.totalorder %s27, 0
      %p75 = por %p73, %p74
      %s77 = sadd.s32 %s76, 1
      %p80 = scmp.eq.s32.totalorder %s21, 2
      %p81 = scmp.ne.s32.totalorder %s76, %s78
      %p82 = scmp.eq.s32.totalorder %s21, 0
      %p83 = por %p81, %p82
      %p84 = scmp.ne.s32.totalorder %s76, %s78
      %p85 = scmp.eq.s32.totalorder %s26, 2
      %p86 = por %p84, %p85
      %p87 = scmp.ne.s32.totalorder %s78, %s79
      %p88 = scmp.eq.s32.totalorder %s26, 0
      %p89 = por %p87, %p88
      %p90 = scmp.ne.s32.totalorder %s78, %s79
      %p91 = scmp.eq.s32.totalorder %s27, 2
      %p92 = por %p90, %p91
      %p94 = scmp.ne.s32.totalorder %s79, %s93
      %p95 = scmp.eq.s32.totalorder %s27, 0
      %p96 = por %p94, %p95
      %s98 = sadd.s32 %s97, 1
      %p101 = scmp.eq.s32.totalorder %s21, 2
      %p102 = scmp.ne.s32.totalorder %s97, %s99
      %p103 = scmp.eq.s32.totalorder %s21, 0
      %p104 = por %p102, %p103
      %p105 = scmp.ne.s32.totalorder %s97, %s99
      %p106 = scmp.eq.s32.totalorder %s26, 2
      %p107 = por %p105, %p106
      %p108 = scmp.ne.s32.totalorder %s99, %s100
      %p109 = scmp.eq.s32.totalorder %s26, 0
      %p110 = por %p108, %p109
      %p111 = scmp.ne.s32.totalorder %s99, %s100
      %p112 = scmp.eq.s32.totalorder %s27, 2
      %p113 = por %p111, %p112
      %p115 = scmp.ne.s32.totalorder %s100, %s114
      %p116 = scmp.eq.s32.totalorder %s27, 0
      %p117 = por %p115, %p116
      %s119 = sadd.s32 %s118, 1
      %p122 = scmp.eq.s32.totalorder %s21, 2
      %p123 = scmp.ne.s32.totalorder %s118, %s120
      %p124 = scmp.eq.s32.totalorder %s21, 0
      %p125 = por %p123, %p124
      %p126 = scmp.ne.s32.totalorder %s118, %s120
      %p127 = scmp.eq.s32.totalorder %s26, 2
      %p128 = por %p126, %p127
      %p129 = scmp.ne.s32.totalorder %s120, %s121
      %p130 = scmp.eq.s32.totalorder %s26, 0
      %p131 = por %p129, %p130
      %p132 = scmp.ne.s32.totalorder %s120, %s121
      %p133 = scmp.eq.s32.totalorder %s27, 2
      %p134 = por %p132, %p133
      %p136 = scmp.ne.s32.totalorder %s121, %s135
      %p137 = scmp.eq.s32.totalorder %s27, 0
      %p138 = por %p136, %p137
      %s140 = sadd.s32 %s139, 1
      %p143 = scmp.eq.s32.totalorder %s21, 2
      %p144 = scmp.ne.s32.totalorder %s139, %s141
      %p145 = scmp.eq.s32.totalorder %s21, 0
      %p146 = por %p144, %p145
      %p147 = scmp.ne.s32.totalorder %s139, %s141
      %p148 = scmp.eq.s32.totalorder %s26, 2
      %p149 = por %p147, %p148
      %p150 = scmp.ne.s32.totalorder %s141, %s142
      %p151 = scmp.eq.s32.totalorder %s26, 0
      %p152 = por %p150, %p151
      %p153 = scmp.ne.s32.totalorder %s141, %s142
      %p154 = scmp.eq.s32.totalorder %s27, 2
      %p155 = por %p153, %p154
      %p157 = scmp.ne.s32.totalorder %s142, %s156
      %p158 = scmp.eq.s32.totalorder %s27, 0
      %p159 = por %p157, %p158
      %s161 = sadd.s32 %s160, 1
      %p164 = scmp.eq.s32.totalorder %s21, 2
      %p165 = scmp.ne.s32.totalorder %s160, %s162
      %p166 = scmp.eq.s32.totalorder %s21, 0
      %p167 = por %p165, %p166
      %p168 = scmp.ne.s32.totalorder %s160, %s162
      %p169 = scmp.eq.s32.totalorder %s26, 2
      %p170 = por %p168, %p169
      %p171 = scmp.ne.s32.totalorder %s162, %s163
      %p172 = scmp.eq.s32.totalorder %s26, 0
      %p173 = por %p171, %p172
      %p174 = scmp.ne.s32.totalorder %s162, %s163
      %p175 = scmp.eq.s32.totalorder %s27, 2
      %p176 = por %p174, %p175
      %p178 = scmp.ne.s32.totalorder %s163, %s177
      %p179 = scmp.eq.s32.totalorder %s27, 0
      %p180 = por %p178, %p179
      %s182 = sadd.s32 %s181, 1
      %p185 = scmp.eq.s32.totalorder %s21, 2
      %p186 = scmp.ne.s32.totalorder %s181, %s183
      %p187 = scmp.eq.s32.totalorder %s21, 0
      %p188 = por %p186, %p187
      %p189 = scmp.ne.s32.totalorder %s181, %s183
      %p190 = scmp.eq.s32.totalorder %s26, 2
      %p191 = por %p189, %p190
      %p192 = scmp.ne.s32.totalorder %s183, %s184
      %p193 = scmp.eq.s32.totalorder %s26, 0
      %p194 = por %p192, %p193
      %p195 = scmp.ne.s32.totalorder %s183, %s184
      %p196 = scmp.eq.s32.totalorder %s27, 2
      %p197 = por %p195, %p196
      %p199 = scmp.ne.s32.totalorder %s184, %s198
      %p200 = scmp.eq.s32.totalorder %s27, 0
      %p201 = por %p199, %p200
      %s203 = sadd.s32 %s202, 1
      %p206 = scmp.eq.s32.totalorder %s21, 2
      %p207 = scmp.ne.s32.totalorder %s202, %s204
      %p208 = scmp.eq.s32.totalorder %s21, 0
      %p209 = por %p207, %p208
      %p210 = scmp.ne.s32.totalorder %s202, %s204
      %p211 = scmp.eq.s32.totalorder %s26, 2
      %p212 = por %p210, %p211
      %p213 = scmp.ne.s32.totalorder %s204, %s205
      %p214 = scmp.eq.s32.totalorder %s26, 0
      %p215 = por %p213, %p214
      %p216 = scmp.ne.s32.totalorder %s204, %s205
      %p217 = scmp.eq.s32.totalorder %s27, 2
      %p218 = por %p216, %p217
      %p220 = scmp.ne.s32.totalorder %s205, %s219
      %p221 = scmp.eq.s32.totalorder %s27, 0
      %p222 = por %p220, %p221
      %s223 = ssub.s32 %s21, %s28
      %p224 = scmp.eq.s32.totalorder %s223, 0
      %s226 = sadd.s32 %s225, 1
      %s227 = scalar_select %p224, %s225, %s226
      %p230 = pneg %p224
      %p231 = scmp.eq.s32.totalorder %s21, 2
      %p232 = por %p230, %p231
      %p233 = scmp.ne.s32.totalorder %s225, %s228
      %p234 = scmp.eq.s32.totalorder %s21, 0
      %p235 = por %p233, %p234
      %p236 = scmp.ne.s32.totalorder %s225, %s228
      %p237 = scmp.eq.s32.totalorder %s26, 2
      %p238 = por %p236, %p237
      %p239 = scmp.ne.s32.totalorder %s228, %s229
      %p240 = scmp.eq.s32.totalorder %s26, 0
      %p241 = por %p239, %p240
      %p242 = scmp.ne.s32.totalorder %s228, %s229
      %p243 = scmp.eq.s32.totalorder %s27, 2
      %p244 = por %p242, %p243
      %p246 = scmp.ne.s32.totalorder %s229, %s245
      %p247 = scmp.eq.s32.totalorder %s27, 0
      %p248 = por %p246, %p247
      %p249 = scmp.le.s32.totalorder 1, %s21
      %p250 = scmp.lt.s32.totalorder %s21, 4
      %p251 = pnand %p249, %p250
      %p252 = pneg %p251
      // Predicated region
      $region9: #{net_forward.1} parent=5 // pred_check
        _
      $region10: #{net_forward.1} parent=5 // pred_check_branch
        %254 = sbr.rel (%p251) target = $region12
      $region11: #{net_forward.1} parent=5 // pred_region
        %s255 = ssub.s32 %s21, 1
        // Predicated region
        $region13: #{net_forward.1} parent=11 // pred_check
          %p256 = pneg %p68
        $region14: #{net_forward.1} parent=11 // pred_check_branch
          %258 = sbr.rel (%p256) target = $region16
        $region15: #{net_forward.1} parent=11 // pred_region
          %260 = vsyncadd [#allocation5], 0
          %s261 = sshll.u32 %s1, 4
          %s262 = int_to_ptr.hbm [resolvable:$true] %s261
          %s263 = sshll.u32 [#allocation4], 4
          %s264 = int_to_ptr.vmem [resolvable:$true] %s263
          %269 = dma.hbm_to_vmem [thread:$0]  %s262, 256, %s264, [#allocation5], 64, 64, 4
        $region16: #{net_forward.1} parent=11 // pred_fallthru
          _
        // Predicated region
        $region17: #{net_forward.1} parent=11 // pred_check
          %p270 = pneg %p89
        $region18: #{net_forward.1} parent=11 // pred_check_branch
          %272 = sbr.rel (%p270) target = $region20
        $region19: #{net_forward.1} parent=11 // pred_region
          %274 = vsyncadd [#allocation5], 0
          %s276 = sshll.u32 %s2, 4
          %s277 = int_to_ptr.hbm [resolvable:$true] %s276
          %s278 = sshll.u32 [#allocation6], 4
          %s279 = int_to_ptr.vmem [resolvable:$true] %s278
          %281 = dma.hbm_to_vmem [thread:$0]  %s277, 16, %s279, [#allocation5]
        $region20: #{net_forward.1} parent=11 // pred_fallthru
          _
        // Predicated region
        $region21: #{net_forward.1} parent=11 // pred_check
          %p282 = pneg %p110
        $region22: #{net_forward.1} parent=11 // pred_check_branch
          %284 = sbr.rel (%p282) target = $region24
        $region23: #{net_forward.1} parent=11 // pred_region
          %286 = vsyncadd [#allocation8], 0
          %s287 = sshll.u32 %s3, 4
          %s288 = int_to_ptr.hbm [resolvable:$true] %s287
          %s289 = sshll.u32 [#allocation7], 4
          %s290 = int_to_ptr.vmem [resolvable:$true] %s289
          %295 = dma.hbm_to_vmem [thread:$0]  %s288, 1024, %s290, [#allocation8], 64, 64, 4
        $region24: #{net_forward.1} parent=11 // pred_fallthru
          _
        // Predicated region
        $region25: #{net_forward.1} parent=11 // pred_check
          %p296 = pneg %p131
        $region26: #{net_forward.1} parent=11 // pred_check_branch
          %298 = sbr.rel (%p296) target = $region28
        $region27: #{net_forward.1} parent=11 // pred_region
          _
        $region28: #{net_forward.1} parent=11 // pred_fallthru
          _
        // Predicated region
        $region29: #{net_forward.1} parent=11 // pred_check
          %p299 = pneg %p152
        $region30: #{net_forward.1} parent=11 // pred_check_branch
          %301 = sbr.rel (%p299) target = $region32
        $region31: #{net_forward.1} parent=11 // pred_region
          %303 = vsyncadd [#allocation8], 0
          %s304 = sshll.u32 %s5, 4
          %s305 = int_to_ptr.hbm [resolvable:$true] %s304
          %s306 = sshll.u32 [#allocation9], 4
          %s307 = int_to_ptr.vmem [resolvable:$true] %s306
          %312 = dma.hbm_to_vmem [thread:$0]  %s305, 1024, %s307, [#allocation8], 64, 64, 4
        $region32: #{net_forward.1} parent=11 // pred_fallthru
          _
        // Predicated region
        $region33: #{net_forward.1} parent=11 // pred_check
          %p313 = pneg %p173
        $region34: #{net_forward.1} parent=11 // pred_check_branch
          %315 = sbr.rel (%p313) target = $region36
        $region35: #{net_forward.1} parent=11 // pred_region
          _
        $region36: #{net_forward.1} parent=11 // pred_fallthru
          _
        // Predicated region
        $region37: #{net_forward.1} parent=11 // pred_check
          %p316 = pneg %p194
        $region38: #{net_forward.1} parent=11 // pred_check_branch
          %318 = sbr.rel (%p316) target = $region40
        $region39: #{net_forward.1} parent=11 // pred_region
          %320 = vsyncadd [#allocation11], 0
          %s321 = sshll.u32 %s7, 4
          %s322 = int_to_ptr.hbm [resolvable:$true] %s321
          %s323 = sshll.u32 [#allocation10], 4
          %s324 = int_to_ptr.vmem [resolvable:$true] %s323
          %329 = dma.hbm_to_vmem [thread:$0]  %s322, 1024, %s324, [#allocation11], 64, 64, 4
        $region40: #{net_forward.1} parent=11 // pred_fallthru
          _
        // Predicated region
        $region41: #{net_forward.1} parent=11 // pred_check
          %p330 = pneg %p215
        $region42: #{net_forward.1} parent=11 // pred_check_branch
          %332 = sbr.rel (%p330) target = $region44
        $region43: #{net_forward.1} parent=11 // pred_region
          _
        $region44: #{net_forward.1} parent=11 // pred_fallthru
          _
      $region12: #{net_forward.1} parent=5 // pred_fallthru
        _
      %p333 = scmp.lt.s32.totalorder %s21, 3
      // Predicated region
      $region45: #{net_forward.1} parent=5 // pred_check
        %p334 = pneg %p333
      $region46: #{net_forward.1} parent=5 // pred_check_branch
        %336 = sbr.rel (%p334) target = $region48
      $region47: #{net_forward.1} parent=5 // pred_region
        // Predicated region
        $region49: #{net_forward.1} parent=47 // pred_check
          %p337 = pneg %p41
        $region50: #{net_forward.1} parent=47 // pred_check_branch
          %339 = sbr.rel (%p337) target = $region52
        $region51: #{net_forward.1} parent=47 // pred_region
          %s340 = sand.u32 %s31, 1
          %s341 = scalar_lea.sflag [#allocation3], %s340
          %s342 = sand.u32 %s31, 1
          %s343 = smul.addr %s342, 8
          %s344 = scalar_lea.vmem [#allocation2], %s343
          %346 = vsyncadd %s341, 0
          %s347 = smul.addr %s21, 8
          %s348 = scalar_lea.hbm %s0, %s347
          %s350 = sshll.u32 %s348, 4
          %s351 = int_to_ptr.hbm [resolvable:$true] %s350
          %s352 = sshll.u32 %s344, 4
          %s353 = int_to_ptr.vmem [resolvable:$true] %s352
          %355 = dma.hbm_to_vmem [thread:$0]  %s351, 128, %s353, %s341
        $region52: #{net_forward.1} parent=47 // pred_fallthru
          _
      $region48: #{net_forward.1} parent=5 // pred_fallthru
        _
      %p356 = scmp.le.s32.totalorder 1, %s21
      %p357 = scmp.lt.s32.totalorder %s21, 4
      %p358 = pnand %p356, %p357
      %p359 = pneg %p358
      // Predicated region
      $region53: #{net_forward.1} parent=5 // pred_check
        _
      $region54: #{net_forward.1} parent=5 // pred_check_branch
        %361 = sbr.rel (%p358) target = $region56
      $region55: #{net_forward.1} parent=5 // pred_region
        %s362 = ssub.s32 %s21, 1
        %s363 = sand.u32 %s34, 1
        %s364 = scalar_lea.sflag [#allocation3], %s363
        %s365 = sand.u32 %s34, 1
        %s366 = smul.addr %s365, 8
        %s367 = scalar_lea.vmem [#allocation2], %s366
        // Predicated region
        $region57: #{net_forward.1} parent=55 // pred_check
          %p368 = pneg %p47
        $region58: #{net_forward.1} parent=55 // pred_check_branch
          %370 = sbr.rel (%p368) target = $region60
        $region59: #{net_forward.1} parent=55 // pred_region
          %372 = dma.done %s364, 128
        $region60: #{net_forward.1} parent=55 // pred_fallthru
          _
        // Predicated region
        $region61: #{net_forward.1} parent=55 // pred_check
          %p373 = pneg %p68
        $region62: #{net_forward.1} parent=55 // pred_check_branch
          %375 = sbr.rel (%p373) target = $region64
        $region63: #{net_forward.1} parent=55 // pred_region
          %377 = dma.done [#allocation5], 256
        $region64: #{net_forward.1} parent=55 // pred_fallthru
          _
        // Predicated region
        $region65: #{net_forward.1} parent=55 // pred_check
          %p378 = pneg %p89
        $region66: #{net_forward.1} parent=55 // pred_check_branch
          %380 = sbr.rel (%p378) target = $region68
        $region67: #{net_forward.1} parent=55 // pred_region
          %382 = dma.done [#allocation5], 16
        $region68: #{net_forward.1} parent=55 // pred_fallthru
          _
        // Predicated region
        $region69: #{net_forward.1} parent=55 // pred_check
          %p383 = pneg %p110
        $region70: #{net_forward.1} parent=55 // pred_check_branch
          %385 = sbr.rel (%p383) target = $region72
        $region71: #{net_forward.1} parent=55 // pred_region
          %387 = dma.done [#allocation8], 1024
        $region72: #{net_forward.1} parent=55 // pred_fallthru
          _
        // Predicated region
        $region73: #{net_forward.1} parent=55 // pred_check
          %p388 = pneg %p152
        $region74: #{net_forward.1} parent=55 // pred_check_branch
          %390 = sbr.rel (%p388) target = $region76
        $region75: #{net_forward.1} parent=55 // pred_region
          %392 = dma.done [#allocation8], 1024
        $region76: #{net_forward.1} parent=55 // pred_fallthru
          _
        // Predicated region
        $region77: #{net_forward.1} parent=55 // pred_check
          %p393 = pneg %p194
        $region78: #{net_forward.1} parent=55 // pred_check_branch
          %395 = sbr.rel (%p393) target = $region80
        $region79: #{net_forward.1} parent=55 // pred_region
          %397 = dma.done [#allocation11], 1024
        $region80: #{net_forward.1} parent=55 // pred_fallthru
          _
        %s398 = sand.u32 %s34, 1
        %s399 = scalar_lea.sflag [#allocation3], %s398
        %s400 = sand.u32 %s34, 1
        %s401 = smul.addr %s400, 8
        %s402 = scalar_lea.vmem [#allocation2], %s401
        %p403 = pneg %p47
        %p404 = pneg %p44
        %p405 = pneg %p68
        %p406 = pneg %p65
        %p407 = pneg %p89
        %p408 = pneg %p86
        %p409 = pneg %p110
        %p410 = pneg %p107
        %p411 = pneg %p131
        %p412 = pneg %p128
        %p413 = pneg %p152
        %p414 = pneg %p149
        %p415 = pneg %p173
        %p416 = pneg %p170
        %p417 = pneg %p194
        %p418 = pneg %p191
        %p419 = pneg %p215
        %p420 = pneg %p212
        %p421 = pneg %p241
        %p422 = pneg %p238
        %p423 = scmp.lt.s32.totalorder %s26, 2
        %s424 = scalar_select %p423, %s26, 2
        %s425 = smul.addr %s424, 8
        %s426 = scalar_lea.vmem %s9, %s425
        %p427 = scmp.lt.s32.totalorder %s26, 2
        %s428 = scalar_select %p427, %s26, 2
        %s429 = smul.addr %s428, 8
        %s430 = scalar_lea.vmem %s9, %s429
        %v432 = vld [vmem:[%s367] sm:$0xff]
        %v433 = vpack.c.bf16 %v432, %v432
        %v434 = vld [vmem:[#allocation4] sm:$0xf]
        %v435 = vld [vmem:[#allocation4 + $0x4] sm:$0xf]
        %v436 = vld [vmem:[#allocation4 + $0x8] sm:$0xf]
        %v437 = vld [vmem:[#allocation4 + $0xc] sm:$0xf]
        %v438 = vld [vmem:[#allocation6] sm:$0x1]
        %v440 = vperm.slane %v438, 0
        %v446 = vunpack.c.l.b16 %v434
        %v447 = vunpack.c.l.b16 %v435
        %v448 = vunpack.c.l.b16 %v436
        %v449 = vunpack.c.l.b16 %v437
        %v450 = vpack.c.b16 %v447, %v446
        %v451 = vpack.c.b16 %v449, %v448
        %vm454 = vcmask 261120
        %v456 = vsel %vm454, %v433, 0
        %458 = vmatpush.bf16.msra.mxu0 0
        %459 = vmatpush.bf16.msra.mxu0 0
        %460 = vmatpush.bf16.msra.mxu0 0
        %461 = vmatpush.bf16.msra.mxu0 0
        %462 = vmatpush.bf16.msra.mxu0 0
        %463 = vmatpush.bf16.msra.mxu0 0
        %464 = vmatpush.bf16.msra.mxu0 %v451
        %465 = vmatpush.bf16.msra.mxu0 %v450
        %466 = vmatmul.bf16.gmra.mxu0 %v456
        %v467 = vpop.f32.mrf.mxu0
        %v468 = vadd.f32 %v440, %v467
        %v469 = vpop.f32.mrf.mxu0
        %470 = vdwg.mxu0
        %v471 = vmax.f32 %v468, 0.0
        %v472 = vpack.c.bf16 %v471, %v471
        %v473 = vld [vmem:[#allocation7] sm:$0xf]
        %v474 = vld [vmem:[#allocation7 + $0x4] sm:$0xf]
        %v475 = vld [vmem:[#allocation7 + $0x8] sm:$0xf]
        %v476 = vld [vmem:[#allocation7 + $0xc] sm:$0xf]
        %v477 = vld [vmem:[#allocation7 + $0x10] sm:$0xf]
        %v478 = vld [vmem:[#allocation7 + $0x14] sm:$0xf]
        %v479 = vld [vmem:[#allocation7 + $0x18] sm:$0xf]
        %v480 = vld [vmem:[#allocation7 + $0x1c] sm:$0xf]
        %v481 = vld [vmem:[#allocation7 + $0x20] sm:$0xf]
        %v482 = vld [vmem:[#allocation7 + $0x24] sm:$0xf]
        %v483 = vld [vmem:[#allocation7 + $0x28] sm:$0xf]
        %v484 = vld [vmem:[#allocation7 + $0x2c] sm:$0xf]
        %v485 = vld [vmem:[#allocation7 + $0x30] sm:$0xf]
        %v486 = vld [vmem:[#allocation7 + $0x34] sm:$0xf]
        %v487 = vld [vmem:[#allocation7 + $0x38] sm:$0xf]
        %v488 = vld [vmem:[#allocation7 + $0x3c] sm:$0xf]
        %v489 = vld [vmem:[%s4] sm:$0x1]
        %v491 = vperm.slane %v489, 0
        %v509 = vunpack.c.l.b16 %v473
        %v510 = vunpack.c.l.b16 %v474
        %v511 = vunpack.c.l.b16 %v475
        %v512 = vunpack.c.l.b16 %v476
        %v513 = vunpack.c.l.b16 %v477
        %v514 = vunpack.c.l.b16 %v478
        %v515 = vunpack.c.l.b16 %v479
        %v516 = vunpack.c.l.b16 %v480
        %v517 = vunpack.c.l.b16 %v481
        %v518 = vunpack.c.l.b16 %v482
        %v519 = vunpack.c.l.b16 %v483
        %v520 = vunpack.c.l.b16 %v484
        %v521 = vunpack.c.l.b16 %v485
        %v522 = vunpack.c.l.b16 %v486
        %v523 = vunpack.c.l.b16 %v487
        %v524 = vunpack.c.l.b16 %v488
        %v525 = vpack.c.b16 %v510, %v509
        %v526 = vpack.c.b16 %v512, %v511
        %v527 = vpack.c.b16 %v514, %v513
        %v528 = vpack.c.b16 %v516, %v515
        %v529 = vpack.c.b16 %v518, %v517
        %v530 = vpack.c.b16 %v520, %v519
        %v531 = vpack.c.b16 %v522, %v521
        %v532 = vpack.c.b16 %v524, %v523
        %541 = vmatpush.bf16.msra.mxu0 %v532
        %542 = vmatpush.bf16.msra.mxu0 %v531
        %543 = vmatpush.bf16.msra.mxu0 %v530
        %544 = vmatpush.bf16.msra.mxu0 %v529
        %545 = vmatpush.bf16.msra.mxu0 %v528
        %546 = vmatpush.bf16.msra.mxu0 %v527
        %547 = vmatpush.bf16.msra.mxu0 %v526
        %548 = vmatpush.bf16.msra.mxu0 %v525
        %549 = vmatmul.bf16.gmra.mxu0 %v472
        %v550 = vpop.f32.mrf.mxu0
        %v551 = vadd.f32 %v491, %v550
        %v552 = vpop.f32.mrf.mxu0
        %553 = vdwg.mxu0
        %v554 = vmax.f32 %v551, 0.0
        %v555 = vpack.c.bf16 %v554, %v554
        %v556 = vld [vmem:[#allocation9] sm:$0xf]
        %v557 = vld [vmem:[#allocation9 + $0x4] sm:$0xf]
        %v558 = vld [vmem:[#allocation9 + $0x8] sm:$0xf]
        %v559 = vld [vmem:[#allocation9 + $0xc] sm:$0xf]
        %v560 = vld [vmem:[#allocation9 + $0x10] sm:$0xf]
        %v561 = vld [vmem:[#allocation9 + $0x14] sm:$0xf]
        %v562 = vld [vmem:[#allocation9 + $0x18] sm:$0xf]
        %v563 = vld [vmem:[#allocation9 + $0x1c] sm:$0xf]
        %v564 = vld [vmem:[#allocation9 + $0x20] sm:$0xf]
        %v565 = vld [vmem:[#allocation9 + $0x24] sm:$0xf]
        %v566 = vld [vmem:[#allocation9 + $0x28] sm:$0xf]
        %v567 = vld [vmem:[#allocation9 + $0x2c] sm:$0xf]
        %v568 = vld [vmem:[#allocation9 + $0x30] sm:$0xf]
        %v569 = vld [vmem:[#allocation9 + $0x34] sm:$0xf]
        %v570 = vld [vmem:[#allocation9 + $0x38] sm:$0xf]
        %v571 = vld [vmem:[#allocation9 + $0x3c] sm:$0xf]
        %v572 = vld [vmem:[%s6] sm:$0x1]
        %v574 = vperm.slane %v572, 0
        %v592 = vunpack.c.l.b16 %v556
        %v593 = vunpack.c.l.b16 %v557
        %v594 = vunpack.c.l.b16 %v558
        %v595 = vunpack.c.l.b16 %v559
        %v596 = vunpack.c.l.b16 %v560
        %v597 = vunpack.c.l.b16 %v561
        %v598 = vunpack.c.l.b16 %v562
        %v599 = vunpack.c.l.b16 %v563
        %v600 = vunpack.c.l.b16 %v564
        %v601 = vunpack.c.l.b16 %v565
        %v602 = vunpack.c.l.b16 %v566
        %v603 = vunpack.c.l.b16 %v567
        %v604 = vunpack.c.l.b16 %v568
        %v605 = vunpack.c.l.b16 %v569
        %v606 = vunpack.c.l.b16 %v570
        %v607 = vunpack.c.l.b16 %v571
        %v608 = vpack.c.b16 %v593, %v592
        %v609 = vpack.c.b16 %v595, %v594
        %v610 = vpack.c.b16 %v597, %v596
        %v611 = vpack.c.b16 %v599, %v598
        %v612 = vpack.c.b16 %v601, %v600
        %v613 = vpack.c.b16 %v603, %v602
        %v614 = vpack.c.b16 %v605, %v604
        %v615 = vpack.c.b16 %v607, %v606
        %624 = vmatpush.bf16.msra.mxu0 %v615
        %625 = vmatpush.bf16.msra.mxu0 %v614
        %626 = vmatpush.bf16.msra.mxu0 %v613
        %627 = vmatpush.bf16.msra.mxu0 %v612
        %628 = vmatpush.bf16.msra.mxu0 %v611
        %629 = vmatpush.bf16.msra.mxu0 %v610
        %630 = vmatpush.bf16.msra.mxu0 %v609
        %631 = vmatpush.bf16.msra.mxu0 %v608
        %632 = vmatmul.bf16.gmra.mxu0 %v555
        %v633 = vpop.f32.mrf.mxu0
        %v634 = vadd.f32 %v574, %v633
        %v635 = vpop.f32.mrf.mxu0
        %636 = vdwg.mxu0
        %v637 = vmax.f32 %v634, 0.0
        %v638 = vpack.c.bf16 %v637, %v637
        %v639 = vld [vmem:[#allocation10] sm:$0xf]
        %v640 = vld [vmem:[#allocation10 + $0x4] sm:$0xf]
        %v641 = vld [vmem:[#allocation10 + $0x8] sm:$0xf]
        %v642 = vld [vmem:[#allocation10 + $0xc] sm:$0xf]
        %v643 = vld [vmem:[#allocation10 + $0x10] sm:$0xf]
        %v644 = vld [vmem:[#allocation10 + $0x14] sm:$0xf]
        %v645 = vld [vmem:[#allocation10 + $0x18] sm:$0xf]
        %v646 = vld [vmem:[#allocation10 + $0x1c] sm:$0xf]
        %v647 = vld [vmem:[#allocation10 + $0x20] sm:$0xf]
        %v648 = vld [vmem:[#allocation10 + $0x24] sm:$0xf]
        %v649 = vld [vmem:[#allocation10 + $0x28] sm:$0xf]
        %v650 = vld [vmem:[#allocation10 + $0x2c] sm:$0xf]
        %v651 = vld [vmem:[#allocation10 + $0x30] sm:$0xf]
        %v652 = vld [vmem:[#allocation10 + $0x34] sm:$0xf]
        %v653 = vld [vmem:[#allocation10 + $0x38] sm:$0xf]
        %v654 = vld [vmem:[#allocation10 + $0x3c] sm:$0xf]
        %v655 = vld [vmem:[%s8] sm:$0x1]
        %v657 = vperm.slane %v655, 0
        %v675 = vunpack.c.l.b16 %v639
        %v676 = vunpack.c.l.b16 %v640
        %v677 = vunpack.c.l.b16 %v641
        %v678 = vunpack.c.l.b16 %v642
        %v679 = vunpack.c.l.b16 %v643
        %v680 = vunpack.c.l.b16 %v644
        %v681 = vunpack.c.l.b16 %v645
        %v682 = vunpack.c.l.b16 %v646
        %v683 = vunpack.c.l.b16 %v647
        %v684 = vunpack.c.l.b16 %v648
        %v685 = vunpack.c.l.b16 %v649
        %v686 = vunpack.c.l.b16 %v650
        %v687 = vunpack.c.l.b16 %v651
        %v688 = vunpack.c.l.b16 %v652
        %v689 = vunpack.c.l.b16 %v653
        %v690 = vunpack.c.l.b16 %v654
        %v691 = vpack.c.b16 %v676, %v675
        %v692 = vpack.c.b16 %v678, %v677
        %v693 = vpack.c.b16 %v680, %v679
        %v694 = vpack.c.b16 %v682, %v681
        %v695 = vpack.c.b16 %v684, %v683
        %v696 = vpack.c.b16 %v686, %v685
        %v697 = vpack.c.b16 %v688, %v687
        %v698 = vpack.c.b16 %v690, %v689
        %707 = vmatpush.bf16.msra.mxu0 %v698
        %708 = vmatpush.bf16.msra.mxu0 %v697
        %709 = vmatpush.bf16.msra.mxu0 %v696
        %710 = vmatpush.bf16.msra.mxu0 %v695
        %711 = vmatpush.bf16.msra.mxu0 %v694
        %712 = vmatpush.bf16.msra.mxu0 %v693
        %713 = vmatpush.bf16.msra.mxu0 %v692
        %714 = vmatpush.bf16.msra.mxu0 %v691
        %715 = vmatmul.bf16.gmra.mxu0 %v638
        %v716 = vpop.f32.mrf.mxu0
        %v717 = vadd.f32 %v657, %v716
        %v718 = vpop.f32.mrf.mxu0
        %719 = vdwg.mxu0
        %720 = vmax.xlane.f32.xlu0 %v717
        %v721 = vpop.xlane.xlu0 %720
        %v722 = vsub.f32 %v717, %v721
        %v723 = vmul.f32 %v722, 1.442695
        %v724 = vpow.pop %v723
        %725 = vadd.xlane.f32.xlu0 %v724
        %v726 = vpop.xlane.xlu0 %725
        %v727 = vlog2.pop %v726
        %v728 = vmul.f32 %v727, 0.6931472
        %v729 = vsub.f32 %v722, %v728
        %vm730 = vcmask 64512
        %731 = vst.msk [vmem:[%s430] sm:$0xff] %vm730, %v729
        %p732 = scmp.lt.s32.totalorder %s26, 2
        %s733 = scalar_select %p732, %s26, 2
        %s734 = smul.addr %s733, 8
        %s735 = scalar_lea.vmem %s9, %s734
        // Predicated region
        $region81: #{net_forward.1} parent=55 // pred_check
          %p736 = pneg %p238
        $region82: #{net_forward.1} parent=55 // pred_check_branch
          %738 = sbr.rel (%p736) target = $region84
        $region83: #{net_forward.1} parent=55 // pred_region
          _
        $region84: #{net_forward.1} parent=55 // pred_fallthru
          _
      $region56: #{net_forward.1} parent=5 // pred_fallthru
        _
      %p739 = scmp.le.s32.totalorder 2, %s21
      // Predicated region
      $region85: #{net_forward.1} parent=5 // pred_check
        %p740 = pneg %p739
      $region86: #{net_forward.1} parent=5 // pred_check_branch
        %742 = sbr.rel (%p740) target = $region88
      $region87: #{net_forward.1} parent=5 // pred_region
        %s743 = ssub.s32 %s21, 2
        // Predicated region
        $region89: #{net_forward.1} parent=87 // pred_check
          %p744 = pneg %p244
        $region90: #{net_forward.1} parent=87 // pred_check_branch
          %746 = sbr.rel (%p744) target = $region92
        $region91: #{net_forward.1} parent=87 // pred_region
          %p747 = scmp.lt.s32.totalorder %s27, 2
          %s748 = scalar_select %p747, %s27, 2
          %s749 = smul.addr %s748, 8
          %s750 = scalar_lea.vmem %s9, %s749
        $region92: #{net_forward.1} parent=87 // pred_fallthru
          _
      $region88: #{net_forward.1} parent=5 // pred_fallthru
        _
    $region6: #{net_forward.1} parent=1 // loop_footer
      %s25 = sadd.s32 1, %s21
    $region7: #{net_forward.1} parent=1 // loop_footer_branch
      %20 = sbr.rel target = $region3
    $region8: #{net_forward.1} parent=1 // loop_exit
      _
    %751 = vsyncpa [#allocation3], 1
    %s752 = scalar_lea.sflag [#allocation3], 1
    %753 = vsyncpa %s752, 1
    %754 = vsyncpa [#allocation5], 1
    %755 = vsyncpa [#allocation8], 1
    %756 = vsyncpa [#allocation11], 1

</llo_original>
